<compile_context>
chip_gen: v6e
topology: v6e:2x2x1
jax: 0.10.0
libtpu: 0.0.40
codegen_flags: <defaults>
</compile_context>

<pallas_src>
import functools

import jax
import jax.numpy as jnp
import numpy as np
from jax.experimental import pallas as pl
from jax.experimental.pallas import tpu as pltpu

NEG_SLOPE = 0.01                      # torch.nn.LeakyReLU default
VMEM_LIMIT = 32 * 1024 * 1024


def _round_up(x, m):
    return ((x + m - 1) // m) * m


def _lrelu(x):
    return jnp.where(x > 0, x, NEG_SLOPE * x)


def _probe_roll_convention():
    """True iff pltpu.roll(x, s, axis) == jnp.roll(x, s, axis) on this backend."""
    def k(x_ref, o_ref):
        o_ref[...] = pltpu.roll(x_ref[...], 1, axis=1)

    x = jnp.tile(jnp.arange(128, dtype=jnp.float32)[None, :], (8, 1))
    y = pl.pallas_call(k, out_shape=jax.ShapeDtypeStruct((8, 128), jnp.float32))(x)
    return bool(np.asarray(y)[0, 0] == 127.0)


# ---------------------------------------------------------------------------
# Fused kernel
# ---------------------------------------------------------------------------
def _conv_same(a, w_ref, b_ref, tmask_ref, patch, *, c_in, cb, sp, k_pad, jnp_roll):
    """'same' cb^3 conv on activations laid out (c_in, board*128 + site).

    For each kernel tap the whole activation block is rotated along the lane
    (site) axis by the tap's combined linear offset (XLU), multiplied by a
    precomputed per-tap in-bounds mask and stored into the im2col scratch.
    A single MXU dot against the tap-major packed weight finishes the conv.
    """
    r = cb // 2
    taps = cb ** 3
    for t in range(taps):
        k0, rem = divmod(t, cb * cb)
        k1, k2 = divmod(rem, cb)
        off = (k0 - r) * cb * cb + (k1 - r) * cb + (k2 - r)
        shift = ((-off) if jnp_roll else off) % sp
        shifted = a if shift == 0 else pltpu.roll(a, shift, axis=1)
        patch[t * c_in:(t + 1) * c_in, :] = shifted * tmask_ref[t:t + 1, :]
    return (jnp.dot(w_ref[...], patch[0:k_pad, :],
                    preferred_element_type=jnp.float32) + b_ref[:, 0:1])


def _value_nn_kernel(a0_ref, w1m_ref, b1_ref, w2r_ref, b2_ref, w3r_ref, b3_ref,
                     tmask_ref, x2_ref, bb_ref, w1l_ref, b1l_ref, w2l_ref,
                     b2l_ref, w3l_ref, b3l_ref, wcat_hbm,
                     o_ref,
                     patch, x1s, wcat_vmem, dma_sem,
                     *, cb, c2p, csp, sp, nb, bstride, k2p, k3p, out_p, jnp_roll):
    taps = cb ** 3

    # Start streaming the big bf16 bilinear weight HBM->VMEM now; it is only
    # consumed after the conv chain, so the DMA is hidden behind compute.
    wcat_copy = pltpu.make_async_copy(wcat_hbm, wcat_vmem, dma_sem)
    wcat_copy.start()

    # Zero the padded tail rows of the im2col scratch (K padded to 128).
    if k2p > taps * c2p:
        patch[taps * c2p:k2p, :] = jnp.zeros((k2p - taps * c2p, sp), jnp.float32)
    if k3p > taps * csp:
        patch[taps * csp:k3p, :] = jnp.zeros((k3p - taps * csp, sp), jnp.float32)

    # conv1 (1x1x1 channel mix) + LeakyReLU
    a1 = _lrelu(jnp.dot(w1m_ref[...], a0_ref[...],
                        preferred_element_type=jnp.float32) + b1_ref[:, 0:1])
    # conv2 + LeakyReLU
    a2 = _lrelu(_conv_same(a1, w2r_ref, b2_ref, tmask_ref, patch,
                           c_in=c2p, cb=cb, sp=sp, k_pad=k2p, jnp_roll=jnp_roll))
    # conv3 + LeakyReLU
    a3 = _lrelu(_conv_same(a2, w3r_ref, b3_ref, tmask_ref, patch,
                           c_in=csp, cb=cb, sp=sp, k_pad=k3p, jnp_roll=jnp_roll))

    # In-kernel flatten: (channel, board*128+site) -> (board, channel*128+site),
    # matching torch nn.Flatten on NCDHW (feature = c*sites + site) up to the
    # per-channel padding that the head weights were repacked to.
    x1s[...] = jnp.zeros_like(x1s)
    for n in range(nb):
        for c in range(c2p):
            x1s[n:n + 1, c * bstride:(c + 1) * bstride] = (
                a3[c:c + 1, n * bstride:(n + 1) * bstride])

    # Head: Bilinear + Linear -> LReLU -> Linear -> LReLU -> Linear.
    wcat_copy.wait()
    x1b = x1s[...].astype(jnp.bfloat16)
    yb = jnp.dot(x1b, wcat_vmem[...], preferred_element_type=jnp.float32)
    y = (yb[:, 0:out_p] * x2_ref[:, 0:1]
         + yb[:, out_p:2 * out_p] * x2_ref[:, 1:2] + bb_ref[0:1, :])
    h1 = _lrelu(jnp.dot(y, w1l_ref[...], preferred_element_type=jnp.float32)
                + b1l_ref[0:1, :])
    h2 = _lrelu(jnp.dot(h1, w2l_ref[...], preferred_element_type=jnp.float32)
                + b2l_ref[0:1, :])
    o_ref[...] = (jnp.dot(h2, w3l_ref[...], preferred_element_type=jnp.float32)
                  + b3l_ref[0:1, :])


def _fullspec(arr):
    nd = arr.ndim
    return pl.BlockSpec(arr.shape, lambda i, _nd=nd: (0,) * _nd)


# ---------------------------------------------------------------------------
# Parameter init (torch layout, deterministic synthetic weights)
# ---------------------------------------------------------------------------
def init_params(key, cb_size, num_piece_types):
    C2 = num_piece_types * 2
    Csq = num_piece_types ** 2
    k = cb_size
    bf = C2 * cb_size ** 3
    h = cb_size ** 3
    keys = jax.random.split(key, 14)

    def winit(kk, shape, fan_in):
        return jax.random.normal(kk, shape, dtype=jnp.float32) / jnp.sqrt(float(fan_in))

    return {
        "conv1_w": winit(keys[0], (C2, C2, 1, 1, 1), C2),
        "conv1_b": winit(keys[1], (C2,), C2),
        "conv2_w": winit(keys[2], (Csq, C2, k, k, k), C2 * k ** 3),
        "conv2_b": winit(keys[3], (Csq,), C2 * k ** 3),
        "conv3_w": winit(keys[4], (C2, Csq, k, k, k), Csq * k ** 3),
        "conv3_b": winit(keys[5], (C2,), Csq * k ** 3),
        "bil_w":   winit(keys[6], (bf, bf, 2), bf * 2),
        "bil_b":   winit(keys[7], (bf,), bf * 2),
        "lin1_w":  winit(keys[8], (h, bf), bf),
        "lin1_b":  winit(keys[9], (h,), bf),
        "lin2_w":  winit(keys[10], (h, h), h),
        "lin2_b":  winit(keys[11], (h,), h),
        "lin3_w":  winit(keys[12], (1, h), h),
        "lin3_b":  winit(keys[13], (1,), h),
    }


def _build_tap_mask(batch, cb, bstride):
    """Combined per-tap boundary mask (tap, board*128+site): 1 iff all three
    shifted coordinates stay inside the board and the column is a real site."""
    r = cb // 2
    taps = cb ** 3
    tpad = _round_up(taps, 8)
    sp = batch * bstride
    coords = [(d0, d1, d2) for d0 in range(cb) for d1 in range(cb) for d2 in range(cb)]
    m = np.zeros((tpad, sp), np.float32)
    for t, (k0, k1, k2) in enumerate(coords):
        for n in range(batch):
            base = n * bstride
            for s, (d0, d1, d2) in enumerate(coords):
                if (0 <= d0 + k0 - r < cb and 0 <= d1 + k1 - r < cb
                        and 0 <= d2 + k2 - r < cb):
                    m[t, base + s] = 1.0
    return jnp.asarray(m)


def prepare_params(params, cb_size, num_piece_types, batch):
    """One-time repack of torch-layout params into the padded, matmul-ready
    layouts the fused Pallas kernel consumes."""
    cb = cb_size
    assert cb % 2 == 1, "'same' conv assumes an odd kernel size"
    C2 = num_piece_types * 2
    Csq = num_piece_types ** 2
    c2p = _round_up(C2, 8)
    csp = _round_up(Csq, 8)
    sites = cb ** 3
    taps = sites
    bstride = _round_up(sites, 128)
    k2p = _round_up(taps * c2p, 128)
    k3p = _round_up(taps * csp, 128)
    bf = C2 * sites
    in_p = c2p * bstride
    out_p = _round_up(bf, 128)
    h = sites
    hp = _round_up(h, 128)
    f32 = jnp.float32

    # ---- convolution stack --------------------------------------------------
    w1m = jnp.zeros((c2p, c2p), f32).at[:C2, :C2].set(params["conv1_w"][:, :, 0, 0, 0])
    b1 = jnp.zeros((c2p, 128), f32).at[:C2, 0].set(params["conv1_b"])

    def conv_w(w, cout, cin, cout_p, cin_p, k_pad):
        wt = jnp.transpose(w, (0, 2, 3, 4, 1))                 # (cout, k0, k1, k2, cin)
        full = jnp.zeros((cout_p, cb, cb, cb, cin_p), f32)
        full = full.at[:cout, :, :, :, :cin].set(wt)
        flat = full.reshape(cout_p, taps * cin_p)               # tap-major columns
        return jnp.zeros((cout_p, k_pad), f32).at[:, :taps * cin_p].set(flat)

    w2r = conv_w(params["conv2_w"], Csq, C2, csp, c2p, k2p)
    b2 = jnp.zeros((csp, 128), f32).at[:Csq, 0].set(params["conv2_b"])
    w3r = conv_w(params["conv3_w"], C2, Csq, c2p, csp, k3p)
    b3 = jnp.zeros((c2p, 128), f32).at[:C2, 0].set(params["conv3_b"])

    tmask = _build_tap_mask(batch, cb, bstride)

    # ---- bilinear + linear head (bilinear weights stored bf16) --------------
    def pad_in_feat(w_io):
        # torch input-feature i = c*sites + s  ->  padded feature i' = c*bstride + s
        out_dim = w_io.shape[1]
        w3d = w_io.reshape(C2, sites, out_dim)
        wp = jnp.zeros((c2p, bstride, out_dim), f32).at[:C2, :sites, :].set(w3d)
        return wp.reshape(c2p * bstride, out_dim)

    w0 = pad_in_feat(params["bil_w"][:, :, 0].T)                # (in_p, bf)
    w1b = pad_in_feat(params["bil_w"][:, :, 1].T)
    w0p = jnp.zeros((in_p, out_p), f32).at[:, :bf].set(w0)
    w1p = jnp.zeros((in_p, out_p), f32).at[:, :bf].set(w1b)
    wcat = jnp.concatenate([w0p, w1p], axis=1).astype(jnp.bfloat16)   # (in_p, 2*out_p)
    bb = jnp.zeros((8, out_p), f32).at[0, :bf].set(params["bil_b"])

    w1l = jnp.zeros((out_p, hp), f32).at[:bf, :h].set(params["lin1_w"].T)
    b1l = jnp.zeros((8, hp), f32).at[0, :h].set(params["lin1_b"])
    w2l = jnp.zeros((hp, hp), f32).at[:h, :h].set(params["lin2_w"].T)
    b2l = jnp.zeros((8, hp), f32).at[0, :h].set(params["lin2_b"])
    w3l = jnp.zeros((hp, hp), f32).at[:h, :1].set(params["lin3_w"].T)
    b3l = jnp.zeros((8, hp), f32).at[0, :1].set(params["lin3_b"])

    return dict(w1m=w1m, b1=b1, w2r=w2r, b2=b2, w3r=w3r, b3=b3, tmask=tmask,
                wcat=wcat, bb=bb, w1l=w1l, b1l=b1l, w2l=w2l, b2l=b2l,
                w3l=w3l, b3l=b3l)


# ---------------------------------------------------------------------------
# ValueNN forward (single fused pallas_call)
# ---------------------------------------------------------------------------
@functools.partial(jax.jit,
                   static_argnames=("cb_size", "num_piece_types", "roll_like_jnp"))
def value_nn_forward(prep, sparse_board, meta_data, *, cb_size, num_piece_types,
                     roll_like_jnp=True):
    cb = cb_size
    N = sparse_board.shape[0]
    C2 = num_piece_types * 2
    Csq = num_piece_types ** 2
    c2p = _round_up(C2, 8)
    csp = _round_up(Csq, 8)
    sites = cb ** 3
    taps = sites
    bstride = _round_up(sites, 128)
    sp = N * bstride
    k2p = _round_up(taps * c2p, 128)
    k3p = _round_up(taps * csp, 128)
    bf = C2 * sites
    in_p = c2p * bstride
    out_p = _round_up(bf, 128)
    hp = _round_up(sites, 128)
    rows_p = max(8, _round_up(N, 8))

    # sites-in-lanes conv layout: (channel, n*128 + z*cb^2 + y*cb + x)
    sb = jnp.transpose(sparse_board.reshape(N, C2, sites), (1, 0, 2))
    a0 = jnp.zeros((c2p, N, bstride), jnp.float32).at[:C2, :, :sites].set(sb)
    a0 = a0.reshape(c2p, sp)
    x2 = jnp.zeros((rows_p, 128), jnp.float32).at[:N, :2].set(meta_data)

    ins = (a0, prep["w1m"], prep["b1"], prep["w2r"], prep["b2"], prep["w3r"],
           prep["b3"], prep["tmask"], x2, prep["bb"], prep["w1l"], prep["b1l"],
           prep["w2l"], prep["b2l"], prep["w3l"], prep["b3l"], prep["wcat"])
    in_specs = [_fullspec(x) for x in ins[:-1]] + [pl.BlockSpec(memory_space=pl.ANY)]

    kernel = functools.partial(
        _value_nn_kernel, cb=cb, c2p=c2p, csp=csp, sp=sp, nb=N, bstride=bstride,
        k2p=k2p, k3p=k3p, out_p=out_p, jnp_roll=roll_like_jnp)

    out = pl.pallas_call(
        kernel,
        out_shape=jax.ShapeDtypeStruct((rows_p, hp), jnp.float32),
        grid_spec=pltpu.PrefetchScalarGridSpec(
            num_scalar_prefetch=0,
            grid=(1,),
            in_specs=in_specs,
            out_specs=pl.BlockSpec((rows_p, hp), lambda i: (0, 0)),
            scratch_shapes=[
                pltpu.VMEM((max(k2p, k3p), sp), jnp.float32),      # im2col patches
                pltpu.VMEM((rows_p, in_p), jnp.float32),           # flattened boards
                pltpu.VMEM((in_p, 2 * out_p), jnp.bfloat16),       # [W0|W1] landing
                pltpu.SemaphoreType.DMA(()),
            ]),
        compiler_params=pltpu.CompilerParams(
            dimension_semantics=("arbitrary",),
            vmem_limit_bytes=VMEM_LIMIT),
    )(*ins)
    return out[:N, :1]


# ---------------------------------------------------------------------------
# Pure-JAX (XLA) reference of the torch module, for validation
# ---------------------------------------------------------------------------
def reference_forward(params, sparse_board, meta_data):
    def conv3d(x, w, b, pad):
        y = jax.lax.conv_general_dilated(
            x, w, window_strides=(1, 1, 1), padding=pad,
            dimension_numbers=("NCDHW", "OIDHW", "NCDHW"))
        return y + b[None, :, None, None, None]

    cb = sparse_board.shape[-1]
    r = cb // 2
    x = _lrelu(conv3d(sparse_board, params["conv1_w"], params["conv1_b"], [(0, 0)] * 3))
    x = _lrelu(conv3d(x, params["conv2_w"], params["conv2_b"], [(r, r)] * 3))
    x = _lrelu(conv3d(x, params["conv3_w"], params["conv3_b"], [(r, r)] * 3))
    flat = x.reshape(x.shape[0], -1)

    # emulate the kernel's bf16 rounding of the bilinear MXU operands
    flat_q = flat.astype(jnp.bfloat16).astype(jnp.float32)
    w0 = params["bil_w"][:, :, 0].astype(jnp.bfloat16).astype(jnp.float32)
    w1 = params["bil_w"][:, :, 1].astype(jnp.bfloat16).astype(jnp.float32)
    y = ((flat_q @ w0.T) * meta_data[:, 0:1]
         + (flat_q @ w1.T) * meta_data[:, 1:2] + params["bil_b"])

    h = _lrelu(y @ params["lin1_w"].T + params["lin1_b"])
    h = _lrelu(h @ params["lin2_w"].T + params["lin2_b"])
    return h @ params["lin3_w"].T + params["lin3_b"]


# ---------------------------------------------------------------------------
if __name__ == "__main__":
    cb_size = 5            # 5x5x5 raumschach board
    num_piece_types = 4    # small synthetic piece set
    batch = 2

    key = jax.random.PRNGKey(0)
    k_board, k_meta, k_params = jax.random.split(key, 3)

    sparse_board = (
        jax.random.uniform(
            k_board, (batch, num_piece_types * 2, cb_size, cb_size, cb_size)
        ) < 0.15
    ).astype(jnp.float32)
    meta_data = (jax.random.uniform(k_meta, (batch, 2)) * 3.0).astype(jnp.float32)

    params = init_params(k_params, cb_size, num_piece_types)
    prep = prepare_params(params, cb_size, num_piece_types, batch)

    roll_like_jnp = _probe_roll_convention()

    out = value_nn_forward(prep, sparse_board, meta_data,
                           cb_size=cb_size, num_piece_types=num_piece_types,
                           roll_like_jnp=roll_like_jnp)
    out = jax.block_until_ready(out)
    assert out.shape == (batch, 1) and out.dtype == jnp.float32

    ref = reference_forward(params, sparse_board, meta_data)
    np.testing.assert_allclose(np.asarray(out), np.asarray(ref),
                               rtol=5e-2, atol=5e-2)
    print("KERNEL_OK")
</pallas_src>

<mosaic_0001>
module attributes {stable_mosaic.version = 11 : i64} {
  func.func @k(%arg0: memref<8x128xf32, #tpu.memory_space<vmem>>, %arg1: memref<8x128xf32, #tpu.memory_space<vmem>>) attributes {dimension_semantics = [], scalar_prefetch = 0 : i64, scratch_operands = 0 : i64, tpu.core_type = #tpu.core_type<tc>} {
    %c0 = arith.constant 0 : index
    %c0_0 = arith.constant 0 : index
    %0 = vector.load %arg0[%c0, %c0_0] : memref<8x128xf32, #tpu.memory_space<vmem>>, vector<8x128xf32>
    %c1_i32 = arith.constant 1 : i32
    %1 = tpu.dynamic_rotate %0 by %c1_i32 dim 1 : vector<8x128xf32>, i32 -> vector<8x128xf32>
    %c0_1 = arith.constant 0 : index
    %c0_2 = arith.constant 0 : index
    %2 = vector.load %arg1[%c0_1, %c0_2] : memref<8x128xf32, #tpu.memory_space<vmem>>, vector<8x128xf32>
    tpu.vector_store %arg1[%c0_1, %c0_2], %1 {strides = array<i32>} : memref<8x128xf32, #tpu.memory_space<vmem>>, vector<8x128xf32>,
    return
  }
}

</mosaic_0001>

<llo_original>
// kernel: tpu_custom_call.1
$region0: #{tpu_custom_call.1}
  #allocation0 [shape = 'u32[]', space=smem, size = 0x4, offset = 0x4, fixed_abs, tag = 'smem constant byte address 0x4 - core index']
  #allocation1 [shape = 'u32[144,128]{1,0:T(1,128)}', space=vmem, size = 0x12000, scoped, tag = 'internal scratch']
  %s0 = inlined_call_operand.hbm [shape: f32[8,128], index: 0, kind: input, shape index: {}]
  %s1 = inlined_call_operand.hbm [shape: f32[8,128], index: 1, kind: output, shape index: {}]
  %s2 = sld [smem:[#allocation0]]
  $region18: #{tpu_custom_call.1} parent=0
    _
  %s4 = ssub.s32 1, %s2
  %s5 = scalar_select 0, %s4, %s2
  $region1: #{tpu_custom_call.1} parent=0
    #allocation2 [shape = 'u8[4096]{0}', space=vmem, size = 0x1000, scoped, tag = 'input window, operand 0, single buffered']
    #allocation3 [shape = 's32[1]{0}', space=sflag, size = 0x4, scoped, tag = 'scoped memory for tpu_custom_call.1']
    #allocation4 [shape = 's32[1]{0}', space=sflag, size = 0x4, scoped, tag = 'scoped memory for tpu_custom_call.1']
    #allocation5 [shape = 'u8[4096]{0}', space=vmem, size = 0x1000, scoped, tag = 'output window, operand 0, single buffered']
    %6 = vsyncpa [#allocation3], 0
    %7 = vsyncpa [#allocation4], 0
    // Predicated region
    $region2: #{tpu_custom_call.1} parent=1 // pred_check
      _
    $region3: #{tpu_custom_call.1} parent=1 // pred_check_branch
      %9 = sbr.rel (0) target = $region5
    $region4: #{tpu_custom_call.1} parent=1 // pred_region
      %s11 = ssub.s32 128, 128
      %12 = vsyncadd [#allocation3], %s11
      %s14 = sshll.u32 [#allocation2], 4
      %s15 = int_to_ptr.vmem [resolvable:$true] %s14
      %17 = dma.hbm_to_vmem [thread:$0]  %s0, 128, %s15, [#allocation3]
    $region5: #{tpu_custom_call.1} parent=1 // pred_fallthru
      _
    // Predicated region
    $region6: #{tpu_custom_call.1} parent=1 // pred_check
      _
    $region7: #{tpu_custom_call.1} parent=1 // pred_check_branch
      %19 = sbr.rel (0) target = $region9
    $region8: #{tpu_custom_call.1} parent=1 // pred_region
      %20 = dma.done [#allocation3], 128
    $region9: #{tpu_custom_call.1} parent=1 // pred_fallthru
      _
    %v21 = vld [vmem:[#allocation2] sm:$0xff]
    %22 = vrot.lane.b32.xlu0 %v21, 1
    %v23 = vpop.permute.xlu0 %22
    %24 = vst [vmem:[#allocation5] sm:$0xff] %v23
    // Predicated region
    $region10: #{tpu_custom_call.1} parent=1 // pred_check
      _
    $region11: #{tpu_custom_call.1} parent=1 // pred_check_branch
      %26 = sbr.rel (0) target = $region13
    $region12: #{tpu_custom_call.1} parent=1 // pred_region
      %s28 = ssub.s32 128, 128
      %29 = vsyncadd [#allocation4], %s28
      %s31 = sshll.u32 [#allocation5], 4
      %s32 = int_to_ptr.vmem [resolvable:$true] %s31
      %34 = dma.vmem_to_hbm [thread:$0]  %s32, 128, %s1, [#allocation4]
    $region13: #{tpu_custom_call.1} parent=1 // pred_fallthru
      _
    // Predicated region
    $region14: #{tpu_custom_call.1} parent=1 // pred_check
      _
    $region15: #{tpu_custom_call.1} parent=1 // pred_check_branch
      %36 = sbr.rel (0) target = $region17
    $region16: #{tpu_custom_call.1} parent=1 // pred_region
      %37 = dma.done [#allocation4], 128
    $region17: #{tpu_custom_call.1} parent=1 // pred_fallthru
      _
    %38 = vsyncpa [#allocation3], 1
    %39 = vsyncpa [#allocation4], 1

</llo_original>
